<compile_context>
chip_gen: v5e
topology: v5e:2x2
jax: 0.10.0
libtpu: 0.0.40
codegen_flags: <defaults>
</compile_context>

<pallas_src>
import functools

import jax
import jax.numpy as jnp
from jax.experimental import pallas as pl
from jax.experimental.pallas import tpu as pltpu

LN_EPS = 1e-5  # PyTorch nn.LayerNorm default


def _round_up(x, m):
    return ((x + m - 1) // m) * m


def _pick_hidden_tile(dim, hidden, itemsize, budget_bytes):
    """Largest hidden chunk whose (double-buffered) W1+W2 blocks fit the budget."""
    ht_max = max(128, budget_bytes // (4 * dim * itemsize))
    if hidden <= ht_max:
        return hidden  # weights fully resident, single k step
    best = None
    t = 128
    while t <= ht_max:
        if hidden % t == 0:
            best = t
        t += 128
    return best if best is not None else hidden


# --------------------------------------------------------------------------
# Kernel 1: plain Linear (patch_to_embedding)
# --------------------------------------------------------------------------
def _linear_kernel(x_ref, w_ref, b_ref, o_ref):
    y = jnp.dot(x_ref[...], w_ref[...], preferred_element_type=jnp.float32)
    o_ref[...] = (y + b_ref[...]).astype(o_ref.dtype)


def linear(x2d, w, b, *, compute_dtype=jnp.float32, row_tile=256):
    n_rows, in_dim = x2d.shape
    out_dim = w.shape[1]
    rt = _round_up(min(row_tile, _round_up(n_rows, 8)), 8)
    n_rows_p = _round_up(n_rows, rt)
    xp = x2d if n_rows_p == n_rows else jnp.pad(x2d, ((0, n_rows_p - n_rows), (0, 0)))

    out = pl.pallas_call(
        _linear_kernel,
        out_shape=jax.ShapeDtypeStruct((n_rows_p, out_dim), x2d.dtype),
        grid_spec=pltpu.PrefetchScalarGridSpec(
            num_scalar_prefetch=0,
            grid=(n_rows_p // rt,),
            in_specs=[
                pl.BlockSpec((rt, in_dim), lambda i: (i, 0)),
                pl.BlockSpec((in_dim, out_dim), lambda i: (0, 0)),
                pl.BlockSpec((1, out_dim), lambda i: (0, 0)),
            ],
            out_specs=pl.BlockSpec((rt, out_dim), lambda i: (i, 0)),
        ),
        compiler_params=pltpu.CompilerParams(dimension_semantics=("parallel",)),
    )(xp.astype(compute_dtype), w.astype(compute_dtype),
      b.reshape(1, out_dim).astype(jnp.float32))
    return out[:n_rows]


# --------------------------------------------------------------------------
# Kernel 2: Residual(PreNorm(Attention)) — LN + QKV + softmax attn + out proj + x
# --------------------------------------------------------------------------
def _ln_mha_res_kernel(x_ref, g_ref, beta_ref, wq_ref, wk_ref, wv_ref, wo_ref,
                       bo_ref, o_ref, *, heads, n_valid, scale, eps):
    x = x_ref[0].astype(jnp.float32)                       # (n_pad, dim)
    n_pad = x.shape[0]

    # LayerNorm (PreNorm)
    mu = jnp.mean(x, axis=-1, keepdims=True)
    var = jnp.mean(jnp.square(x - mu), axis=-1, keepdims=True)
    xn = (x - mu) * jax.lax.rsqrt(var + eps) * g_ref[...] + beta_ref[...]
    xc = xn.astype(wq_ref.dtype)

    # residual + out-projection bias, accumulated in f32
    acc = x + bo_ref[...]
    for h in range(heads):                                  # static unroll
        q = jnp.dot(xc, wq_ref[h], preferred_element_type=jnp.float32)  # (n_pad, dh)
        k = jnp.dot(xc, wk_ref[h], preferred_element_type=jnp.float32)
        v = jnp.dot(xc, wv_ref[h], preferred_element_type=jnp.float32)
        s = jnp.einsum('nd,md->nm', q, k,
                       preferred_element_type=jnp.float32) * scale       # (n_pad, n_pad)
        if n_valid < n_pad:                                 # mask zero-padded keys
            key_id = jax.lax.broadcasted_iota(jnp.int32, s.shape, 1)
            s = jnp.where(key_id < n_valid, s, -1e30)
        s = s - jnp.max(s, axis=-1, keepdims=True)
        p = jnp.exp(s)
        p = p / jnp.sum(p, axis=-1, keepdims=True)
        o_h = jnp.dot(p, v, preferred_element_type=jnp.float32)          # (n_pad, dh)
        acc = acc + jnp.dot(o_h.astype(wo_ref.dtype), wo_ref[h],
                            preferred_element_type=jnp.float32)
    o_ref[0] = acc.astype(o_ref.dtype)


def attention_block(x, lp, *, heads, dim_head, compute_dtype=jnp.float32):
    b, n, dim = x.shape
    n_pad = _round_up(n, 8)
    xp = x if n_pad == n else jnp.pad(x, ((0, 0), (0, n_pad - n), (0, 0)))

    # Split the fused QKV / out-proj weights per head in the wrapper so the
    # kernel only does static leading-axis indexing (no minor-dim reshapes).
    wq3 = lp['wq'].reshape(dim, heads, dim_head).transpose(1, 0, 2).astype(compute_dtype)
    wk3 = lp['wk'].reshape(dim, heads, dim_head).transpose(1, 0, 2).astype(compute_dtype)
    wv3 = lp['wv'].reshape(dim, heads, dim_head).transpose(1, 0, 2).astype(compute_dtype)
    wo3 = lp['wo'].reshape(heads, dim_head, dim).astype(compute_dtype)

    kernel = functools.partial(_ln_mha_res_kernel, heads=heads, n_valid=n,
                               scale=dim_head ** -0.5, eps=LN_EPS)
    out = pl.pallas_call(
        kernel,
        out_shape=jax.ShapeDtypeStruct((b, n_pad, dim), x.dtype),
        grid_spec=pltpu.PrefetchScalarGridSpec(
            num_scalar_prefetch=0,
            grid=(b,),
            in_specs=[
                pl.BlockSpec((1, n_pad, dim), lambda i: (i, 0, 0)),        # x
                pl.BlockSpec((1, dim), lambda i: (0, 0)),                  # ln gamma
                pl.BlockSpec((1, dim), lambda i: (0, 0)),                  # ln beta
                pl.BlockSpec((heads, dim, dim_head), lambda i: (0, 0, 0)),  # Wq
                pl.BlockSpec((heads, dim, dim_head), lambda i: (0, 0, 0)),  # Wk
                pl.BlockSpec((heads, dim, dim_head), lambda i: (0, 0, 0)),  # Wv
                pl.BlockSpec((heads, dim_head, dim), lambda i: (0, 0, 0)),  # Wo
                pl.BlockSpec((1, dim), lambda i: (0, 0)),                  # bo
            ],
            out_specs=pl.BlockSpec((1, n_pad, dim), lambda i: (i, 0, 0)),
        ),
        compiler_params=pltpu.CompilerParams(dimension_semantics=("parallel",)),
    )(xp,
      lp['ln1_g'].reshape(1, dim).astype(jnp.float32),
      lp['ln1_b'].reshape(1, dim).astype(jnp.float32),
      wq3, wk3, wv3, wo3,
      lp['bo'].reshape(1, dim).astype(jnp.float32))
    return out[:, :n]


# --------------------------------------------------------------------------
# Kernel 3: Residual(PreNorm(FeedForward)) — LN + Linear + GELU + Linear + x
# --------------------------------------------------------------------------
def _ln_ffn_res_kernel(x_ref, g_ref, beta_ref, w1_ref, b1_ref, w2_ref, b2_ref,
                       o_ref, acc_ref, xn_ref, *, eps, approximate_gelu):
    k = pl.program_id(1)

    @pl.when(k == 0)
    def _():
        x = x_ref[...].astype(jnp.float32)
        mu = jnp.mean(x, axis=-1, keepdims=True)
        var = jnp.mean(jnp.square(x - mu), axis=-1, keepdims=True)
        xn = (x - mu) * jax.lax.rsqrt(var + eps) * g_ref[...] + beta_ref[...]
        xn_ref[...] = xn.astype(xn_ref.dtype)      # LN computed once per row tile
        acc_ref[...] = jnp.zeros_like(acc_ref)

    # First matmul contracts the full model dim; the hidden axis is chunked.
    h = jnp.dot(xn_ref[...], w1_ref[...], preferred_element_type=jnp.float32)
    h = jax.nn.gelu(h + b1_ref[...], approximate=approximate_gelu)   # exact erf == nn.GELU()
    # Dropout(p=0.0) is the identity -> no-op.
    acc_ref[...] += jnp.dot(h.astype(w2_ref.dtype), w2_ref[...],
                            preferred_element_type=jnp.float32)

    @pl.when(k == pl.num_programs(1) - 1)
    def _():
        o_ref[...] = (acc_ref[...] + b2_ref[...]
                      + x_ref[...].astype(jnp.float32)).astype(o_ref.dtype)  # + residual


def ffn_block(x, lp, *, compute_dtype=jnp.float32, row_tile=256, hidden_tile=None,
              approximate_gelu=False, weight_vmem_budget_bytes=20 * 1024 * 1024):
    b, n, dim = x.shape
    hidden = lp['w1'].shape[1]
    n_rows = b * n
    rt = _round_up(min(row_tile, _round_up(n_rows, 8)), 8)
    n_rows_p = _round_up(n_rows, rt)
    x2d = x.reshape(n_rows, dim)
    if n_rows_p != n_rows:
        x2d = jnp.pad(x2d, ((0, n_rows_p - n_rows), (0, 0)))

    c_itemsize = jnp.dtype(compute_dtype).itemsize
    ht = hidden_tile or _pick_hidden_tile(dim, hidden, c_itemsize,
                                          weight_vmem_budget_bytes)
    assert hidden % ht == 0, "hidden_tile must divide hidden"

    kernel = functools.partial(_ln_ffn_res_kernel, eps=LN_EPS,
                               approximate_gelu=approximate_gelu)
    out = pl.pallas_call(
        kernel,
        out_shape=jax.ShapeDtypeStruct((n_rows_p, dim), x.dtype),
        grid_spec=pltpu.PrefetchScalarGridSpec(
            num_scalar_prefetch=0,
            grid=(n_rows_p // rt, hidden // ht),
            in_specs=[
                pl.BlockSpec((rt, dim), lambda i, k: (i, 0)),   # x row tile (resident over k)
                pl.BlockSpec((1, dim), lambda i, k: (0, 0)),    # ln gamma
                pl.BlockSpec((1, dim), lambda i, k: (0, 0)),    # ln beta
                pl.BlockSpec((dim, ht), lambda i, k: (0, k)),   # W1 hidden chunk
                pl.BlockSpec((1, ht), lambda i, k: (0, k)),     # b1 chunk
                pl.BlockSpec((ht, dim), lambda i, k: (k, 0)),   # W2 hidden chunk
                pl.BlockSpec((1, dim), lambda i, k: (0, 0)),    # b2
            ],
            out_specs=pl.BlockSpec((rt, dim), lambda i, k: (i, 0)),
            scratch_shapes=[pltpu.VMEM((rt, dim), jnp.float32),   # f32 accumulator
                            pltpu.VMEM((rt, dim), compute_dtype)],  # cached LN(x)
        ),
        compiler_params=pltpu.CompilerParams(
            dimension_semantics=("parallel", "arbitrary")),
    )(x2d,
      lp['ln2_g'].reshape(1, dim).astype(jnp.float32),
      lp['ln2_b'].reshape(1, dim).astype(jnp.float32),
      lp['w1'].astype(compute_dtype),
      lp['b1'].reshape(1, hidden).astype(jnp.float32),
      lp['w2'].astype(compute_dtype),
      lp['b2'].reshape(1, dim).astype(jnp.float32))
    return out[:n_rows].reshape(b, n, dim)


# --------------------------------------------------------------------------
# Kernel 4: mlp_head — LayerNorm + Linear fused
# --------------------------------------------------------------------------
def _ln_linear_kernel(x_ref, g_ref, beta_ref, w_ref, b_ref, o_ref, *, eps):
    x = x_ref[...].astype(jnp.float32)
    mu = jnp.mean(x, axis=-1, keepdims=True)
    var = jnp.mean(jnp.square(x - mu), axis=-1, keepdims=True)
    xn = (x - mu) * jax.lax.rsqrt(var + eps) * g_ref[...] + beta_ref[...]
    y = jnp.dot(xn.astype(w_ref.dtype), w_ref[...],
                preferred_element_type=jnp.float32)
    o_ref[...] = (y + b_ref[...]).astype(o_ref.dtype)


def ln_linear(x2d, gamma, beta, w, bias, *, compute_dtype=jnp.float32):
    n_rows, dim = x2d.shape
    out_dim = w.shape[1]
    rt = _round_up(min(256, _round_up(n_rows, 8)), 8)
    n_rows_p = _round_up(n_rows, rt)
    xp = x2d if n_rows_p == n_rows else jnp.pad(x2d, ((0, n_rows_p - n_rows), (0, 0)))

    out = pl.pallas_call(
        functools.partial(_ln_linear_kernel, eps=LN_EPS),
        out_shape=jax.ShapeDtypeStruct((n_rows_p, out_dim), x2d.dtype),
        grid_spec=pltpu.PrefetchScalarGridSpec(
            num_scalar_prefetch=0,
            grid=(n_rows_p // rt,),
            in_specs=[
                pl.BlockSpec((rt, dim), lambda i: (i, 0)),
                pl.BlockSpec((1, dim), lambda i: (0, 0)),
                pl.BlockSpec((1, dim), lambda i: (0, 0)),
                pl.BlockSpec((dim, out_dim), lambda i: (0, 0)),
                pl.BlockSpec((1, out_dim), lambda i: (0, 0)),
            ],
            out_specs=pl.BlockSpec((rt, out_dim), lambda i: (i, 0)),
        ),
        compiler_params=pltpu.CompilerParams(dimension_semantics=("parallel",)),
    )(xp, gamma.reshape(1, dim).astype(jnp.float32),
      beta.reshape(1, dim).astype(jnp.float32),
      w.astype(compute_dtype), bias.reshape(1, out_dim).astype(jnp.float32))
    return out[:n_rows]


# --------------------------------------------------------------------------
# Full ViT forward (mode='ViT', pool='cls', mask=None, all dropout p=0)
# --------------------------------------------------------------------------
def vit_forward(params, x, *, heads, dim_head, compute_dtype=jnp.float32):
    b, n_p, patch_dim = x.shape
    dim = params['patch_w'].shape[1]

    tok = linear(x.reshape(b * n_p, patch_dim), params['patch_w'],
                 params['patch_b'], compute_dtype=compute_dtype)
    tok = tok.reshape(b, n_p, dim)
    cls = jnp.broadcast_to(params['cls_token'].astype(tok.dtype), (b, 1, dim))
    h = jnp.concatenate([cls, tok], axis=1)
    h = h + params['pos_embedding'][:, :n_p + 1]
    # emb_dropout(p=0) -> identity

    for lp in params['layers']:               # Transformer, mode == 'ViT'
        h = attention_block(h, lp, heads=heads, dim_head=dim_head,
                            compute_dtype=compute_dtype)
        h = ffn_block(h, lp, compute_dtype=compute_dtype)

    cls_out = h[:, 0]                         # pool == 'cls'; to_latent = Identity
    return ln_linear(cls_out, params['head_g'], params['head_b'],
                     params['head_w'], params['head_bias'],
                     compute_dtype=compute_dtype)


# --------------------------------------------------------------------------
# Pure-JAX reference (mirrors the PyTorch module op-for-op)
# --------------------------------------------------------------------------
def vit_reference(params, x, *, heads, dim_head):
    def ln(t, g, b_, eps=LN_EPS):
        mu = t.mean(-1, keepdims=True)
        var = jnp.mean((t - mu) ** 2, -1, keepdims=True)
        return (t - mu) / jnp.sqrt(var + eps) * g + b_

    b, n_p, _ = x.shape
    h = x @ params['patch_w'] + params['patch_b']
    cls = jnp.broadcast_to(params['cls_token'], (b, 1, h.shape[-1]))
    h = jnp.concatenate([cls, h], axis=1)
    h = h + params['pos_embedding'][:, :n_p + 1]
    for lp in params['layers']:
        xn = ln(h, lp['ln1_g'], lp['ln1_b'])
        q, k, v = xn @ lp['wq'], xn @ lp['wk'], xn @ lp['wv']

        def split(t):
            return t.reshape(b, -1, heads, dim_head).transpose(0, 2, 1, 3)

        qh, kh, vh = split(q), split(k), split(v)
        dots = jnp.einsum('bhid,bhjd->bhij', qh, kh) * dim_head ** -0.5
        attn = jax.nn.softmax(dots, axis=-1)
        o = jnp.einsum('bhij,bhjd->bhid', attn, vh)
        o = o.transpose(0, 2, 1, 3).reshape(b, -1, heads * dim_head)
        h = o @ lp['wo'] + lp['bo'] + h
        xn2 = ln(h, lp['ln2_g'], lp['ln2_b'])
        ff = jax.nn.gelu(xn2 @ lp['w1'] + lp['b1'], approximate=False)
        h = ff @ lp['w2'] + lp['b2'] + h
    cls_out = h[:, 0]
    hn = ln(cls_out, params['head_g'], params['head_b'])
    return hn @ params['head_w'] + params['head_bias']


if __name__ == "__main__":
    # Small config consistent with the ViT constructor.
    batch = 2
    image_size = 4          # patch spatial size
    near_band = 1
    num_patches = 8         # spectral bands -> sequence length (before cls token)
    num_classes = 5
    dim = 32
    depth = 2
    heads = 4
    dim_head = 8
    mlp_dim = 64
    patch_dim = image_size ** 2 * near_band     # 16
    inner = heads * dim_head

    key = jax.random.PRNGKey(0)
    keys = iter(jax.random.split(key, 64))

    def nrm(shape, scale=1.0):
        return jax.random.normal(next(keys), shape, dtype=jnp.float32) * scale

    layers = []
    for _ in range(depth):
        layers.append(dict(
            ln1_g=1.0 + nrm((dim,), 0.1), ln1_b=nrm((dim,), 0.1),
            wq=nrm((dim, inner), dim ** -0.5),
            wk=nrm((dim, inner), dim ** -0.5),
            wv=nrm((dim, inner), dim ** -0.5),
            wo=nrm((inner, dim), inner ** -0.5),
            bo=nrm((dim,), 0.02),
            ln2_g=1.0 + nrm((dim,), 0.1), ln2_b=nrm((dim,), 0.1),
            w1=nrm((dim, mlp_dim), dim ** -0.5), b1=nrm((mlp_dim,), 0.02),
            w2=nrm((mlp_dim, dim), mlp_dim ** -0.5), b2=nrm((dim,), 0.02),
        ))
    params = dict(
        patch_w=nrm((patch_dim, dim), patch_dim ** -0.5),
        patch_b=nrm((dim,), 0.02),
        cls_token=nrm((1, 1, dim)),
        pos_embedding=nrm((1, num_patches + 1, dim)),
        layers=layers,
        head_g=1.0 + nrm((dim,), 0.1), head_b=nrm((dim,), 0.1),
        head_w=nrm((dim, num_classes), dim ** -0.5),
        head_bias=nrm((num_classes,), 0.02),
    )

    x = nrm((batch, num_patches, patch_dim))

    logits = jax.block_until_ready(
        vit_forward(params, x, heads=heads, dim_head=dim_head,
                    compute_dtype=jnp.float32))
    ref = vit_reference(params, x, heads=heads, dim_head=dim_head)

    assert logits.shape == (batch, num_classes), logits.shape
    max_err = float(jnp.max(jnp.abs(logits - ref)))
    assert jnp.allclose(logits, ref, atol=1e-2, rtol=1e-2), f"mismatch, max abs err {max_err}"

    print("KERNEL_OK")
</pallas_src>

<mosaic_0001>
module attributes {stable_mosaic.version = 11 : i64} {
  func.func @_linear_kernel(%arg0: i32, %arg1: memref<16x16xf32, #tpu.memory_space<vmem>>, %arg2: memref<16x32xf32, #tpu.memory_space<vmem>>, %arg3: memref<1x32xf32, #tpu.memory_space<vmem>>, %arg4: memref<16x32xf32, #tpu.memory_space<vmem>>) attributes {dimension_semantics = [#tpu.dimension_semantics<parallel>], iteration_bounds = array<i64: 1>, scalar_prefetch = 0 : i64, scratch_operands = 0 : i64, tpu.core_type = #tpu.core_type<tc>, window_params = [{transform_indices = @transform_0, window_bounds = array<i64: 16, 16>}, {pipeline_mode = #tpu.pipeline_mode<synchronous>, transform_indices = @transform_1, window_bounds = array<i64: 16, 32>}, {pipeline_mode = #tpu.pipeline_mode<synchronous>, transform_indices = @transform_2, window_bounds = array<i64: 1, 32>}, {transform_indices = @transform_3, window_bounds = array<i64: 16, 32>}]} {
    %c0 = arith.constant 0 : index
    %c0_0 = arith.constant 0 : index
    %0 = vector.load %arg1[%c0, %c0_0] : memref<16x16xf32, #tpu.memory_space<vmem>>, vector<16x16xf32>
    %c0_1 = arith.constant 0 : index
    %c0_2 = arith.constant 0 : index
    %1 = vector.load %arg2[%c0_1, %c0_2] : memref<16x32xf32, #tpu.memory_space<vmem>>, vector<16x32xf32>
    %cst = arith.constant dense<0.000000e+00> : vector<16x32xf32>
    %2 = tpu.matmul %0, %1, %cst {dimension_numbers = #tpu.dot_dimension_numbers<[1], [0], [0], [1], [0, 0, 1, 1], [], []>} : vector<16x16xf32>, vector<16x32xf32>, vector<16x32xf32> -> vector<16x32xf32>
    %c0_3 = arith.constant 0 : index
    %c0_4 = arith.constant 0 : index
    %3 = vector.load %arg3[%c0_3, %c0_4] : memref<1x32xf32, #tpu.memory_space<vmem>>, vector<1x32xf32>
    %4 = vector.broadcast %3 : vector<1x32xf32> to vector<16x32xf32>
    %5 = arith.addf %2, %4 : vector<16x32xf32>
    %c0_5 = arith.constant 0 : index
    %c0_6 = arith.constant 0 : index
    %6 = vector.load %arg4[%c0_5, %c0_6] : memref<16x32xf32, #tpu.memory_space<vmem>>, vector<16x32xf32>
    tpu.vector_store %arg4[%c0_5, %c0_6], %5 {strides = array<i32>} : memref<16x32xf32, #tpu.memory_space<vmem>>, vector<16x32xf32>,
    return
  }
  func.func @transform_0(%arg0: i32) -> (i32, i32) {
    %c0_i32 = arith.constant 0 : i32
    %c0_i32_0 = arith.constant 0 : i32
    return %arg0, %c0_i32 : i32, i32
  }
  func.func @transform_1(%arg0: i32) -> (i32, i32) {
    %c0_i32 = arith.constant 0 : i32
    %c0_i32_0 = arith.constant 0 : i32
    %c0_i32_1 = arith.constant 0 : i32
    return %c0_i32, %c0_i32_0 : i32, i32
  }
  func.func @transform_2(%arg0: i32) -> (i32, i32) {
    %c0_i32 = arith.constant 0 : i32
    %c0_i32_0 = arith.constant 0 : i32
    %c0_i32_1 = arith.constant 0 : i32
    return %c0_i32, %c0_i32_0 : i32, i32
  }
  func.func @transform_3(%arg0: i32) -> (i32, i32) {
    %c0_i32 = arith.constant 0 : i32
    %c0_i32_0 = arith.constant 0 : i32
    return %arg0, %c0_i32 : i32, i32
  }
}

</mosaic_0001>

<llo_original>
// kernel: tpu_custom_call.1
$region0: #{tpu_custom_call.1}
  #allocation0 [shape = 'u32[]', space=smem, size = 0x4, offset = 0x4, fixed_abs, tag = 'smem constant byte address 0x4 - core index']
  #allocation1 [shape = 'u32[72,128]{1,0:T(1,128)}', space=vmem, size = 0x9000, scoped, tag = 'internal scratch']
  %s0 = inlined_call_operand.hbm [shape: f32[16,16], index: 0, kind: input, shape index: {}]
  %s1 = inlined_call_operand.hbm [shape: f32[16,32], index: 1, kind: input, shape index: {}]
  %s2 = inlined_call_operand.vmem [shape: f32[1,32], index: 2, kind: input, shape index: {}]
  %s3 = inlined_call_operand.hbm [shape: f32[16,32], index: 3, kind: output, shape index: {}]
  %s4 = sld [smem:[#allocation0]]
  $region30: #{tpu_custom_call.1} parent=0
    _
  %s6 = ssub.s32 1, %s4
  %s7 = scalar_select 0, %s6, %s4
  $region1: #{tpu_custom_call.1} parent=0
    #allocation2 [shape = 'u8[8192]{0}', space=vmem, size = 0x2000, scoped, tag = 'input window, operand 0, single buffered']
    #allocation3 [shape = 's32[1]{0}', space=sflag, size = 0x4, scoped, tag = 'scoped memory for tpu_custom_call.1']
    #allocation4 [shape = 's32[1]{0}', space=sflag, size = 0x4, scoped, tag = 'scoped memory for tpu_custom_call.1']
    #allocation5 [shape = 'u8[8192]{0}', space=vmem, size = 0x2000, scoped, tag = 'input window, operand 1, single buffered']
    #allocation6 [shape = 's32[1]{0}', space=sflag, size = 0x4, scoped, tag = 'scoped memory for tpu_custom_call.1']
    #allocation7 [shape = 'u8[8192]{0}', space=vmem, size = 0x2000, scoped, tag = 'output window, operand 0, single buffered']
    %8 = vsyncpa [#allocation3], 0
    %9 = vsyncpa [#allocation6], 0
    %10 = vsyncpa [#allocation4], 0
    // Predicated region
    $region2: #{tpu_custom_call.1} parent=1 // pred_check
      _
    $region3: #{tpu_custom_call.1} parent=1 // pred_check_branch
      %12 = sbr.rel (0) target = $region5
    $region4: #{tpu_custom_call.1} parent=1 // pred_region
      %14 = vsyncadd [#allocation3], 0
      %s15 = sshll.u32 %s0, 4
      %s16 = int_to_ptr.hbm [resolvable:$true] %s15
      %s17 = sshll.u32 [#allocation2], 4
      %s18 = int_to_ptr.vmem [resolvable:$true] %s17
      %23 = dma.hbm_to_vmem [thread:$0]  %s16, 256, %s18, [#allocation3], 128, 128, 8
    $region5: #{tpu_custom_call.1} parent=1 // pred_fallthru
      _
    // Predicated region
    $region6: #{tpu_custom_call.1} parent=1 // pred_check
      _
    $region7: #{tpu_custom_call.1} parent=1 // pred_check_branch
      %25 = sbr.rel (0) target = $region9
    $region8: #{tpu_custom_call.1} parent=1 // pred_region
      %27 = vsyncadd [#allocation6], 0
      %s28 = sshll.u32 %s1, 4
      %s29 = int_to_ptr.hbm [resolvable:$true] %s28
      %s30 = sshll.u32 [#allocation5], 4
      %s31 = int_to_ptr.vmem [resolvable:$true] %s30
      %36 = dma.hbm_to_vmem [thread:$0]  %s29, 256, %s31, [#allocation6], 128, 128, 8
    $region9: #{tpu_custom_call.1} parent=1 // pred_fallthru
      _
    // Predicated region
    $region10: #{tpu_custom_call.1} parent=1 // pred_check
      _
    $region11: #{tpu_custom_call.1} parent=1 // pred_check_branch
      %38 = sbr.rel (0) target = $region13
    $region12: #{tpu_custom_call.1} parent=1 // pred_region
      _
    $region13: #{tpu_custom_call.1} parent=1 // pred_fallthru
      _
    // Predicated region
    $region14: #{tpu_custom_call.1} parent=1 // pred_check
      _
    $region15: #{tpu_custom_call.1} parent=1 // pred_check_branch
      %40 = sbr.rel (0) target = $region17
    $region16: #{tpu_custom_call.1} parent=1 // pred_region
      %42 = dma.done [#allocation3], 256
    $region17: #{tpu_custom_call.1} parent=1 // pred_fallthru
      _
    // Predicated region
    $region18: #{tpu_custom_call.1} parent=1 // pred_check
      _
    $region19: #{tpu_custom_call.1} parent=1 // pred_check_branch
      %44 = sbr.rel (0) target = $region21
    $region20: #{tpu_custom_call.1} parent=1 // pred_region
      %46 = dma.done [#allocation6], 256
    $region21: #{tpu_custom_call.1} parent=1 // pred_fallthru
      _
    %v47 = vld [vmem:[#allocation2] sm:$0xff]
    %v48 = vld [vmem:[#allocation2 + $0x8] sm:$0xff]
    %v49 = vld [vmem:[#allocation5] sm:$0xff]
    %v50 = vld [vmem:[#allocation5 + $0x8] sm:$0xff]
    %v51 = vld [vmem:[%s2] sm:$0x1]
    %v53 = vperm.slane %v51, 0
    %vm55 = vcmask 130048
    %v57 = vsel %vm55, %v47, 0
    %v60 = vsel %vm55, %v48, 0
    %62 = vmatpush.msra.mxu0 0.0
    %63 = vmatpush.msra.mxu0 0.0
    %64 = vmatpush.msra.mxu0 0.0
    %65 = vmatpush.msra.mxu0 0.0
    %66 = vmatpush.msra.mxu0 0.0
    %67 = vmatpush.msra.mxu0 0.0
    %68 = vmatpush.msra.mxu0 0.0
    %69 = vmatpush.msra.mxu0 0.0
    %70 = vmatpush.msra.mxu0 0.0
    %71 = vmatpush.msra.mxu0 0.0
    %72 = vmatpush.msra.mxu0 0.0
    %73 = vmatpush.msra.mxu0 0.0
    %74 = vmatpush.msra.mxu0 0.0
    %75 = vmatpush.msra.mxu0 0.0
    %76 = vmatpush.msra.mxu0 %v50
    %77 = vmatpush.msra.mxu0 %v49
    %78 = vmatmul.f32.gmra.mxu0 %v57
    %v79 = vpop.f32.mrf.mxu0
    %v80 = vadd.f32 %v53, %v79
    %81 = vmatmul.f32.gmra.mxu0 %v60
    %v82 = vpop.f32.mrf.mxu0
    %v83 = vadd.f32 %v53, %v82
    %84 = vdwg.mxu0
    %vm85 = vcmask 261120
    %86 = vst.msk [vmem:[#allocation7] sm:$0xff] %vm85, %v80
    %87 = vst.msk [vmem:[#allocation7 + $0x8] sm:$0xff] %vm85, %v83
    // Predicated region
    $region22: #{tpu_custom_call.1} parent=1 // pred_check
      _
    $region23: #{tpu_custom_call.1} parent=1 // pred_check_branch
      %89 = sbr.rel (0) target = $region25
    $region24: #{tpu_custom_call.1} parent=1 // pred_region
      %91 = vsyncadd [#allocation4], 0
      %s92 = sshll.u32 [#allocation7], 4
      %s93 = int_to_ptr.vmem [resolvable:$true] %s92
      %s94 = sshll.u32 %s3, 4
      %s95 = int_to_ptr.hbm [resolvable:$true] %s94
      %100 = dma.vmem_to_hbm [thread:$0]  %s93, 256, %s95, [#allocation4], 128, 128, 8
    $region25: #{tpu_custom_call.1} parent=1 // pred_fallthru
      _
    // Predicated region
    $region26: #{tpu_custom_call.1} parent=1 // pred_check
      _
    $region27: #{tpu_custom_call.1} parent=1 // pred_check_branch
      %102 = sbr.rel (0) target = $region29
    $region28: #{tpu_custom_call.1} parent=1 // pred_region
      %104 = dma.done [#allocation4], 256
    $region29: #{tpu_custom_call.1} parent=1 // pred_fallthru
      _
    %105 = vsyncpa [#allocation3], 1
    %106 = vsyncpa [#allocation6], 1
    %107 = vsyncpa [#allocation4], 1

</llo_original>
